<compile_context>
chip_gen: v7x
topology: tpu7x:2x2x1
jax: 0.10.0
libtpu: 0.0.40
codegen_flags: <defaults>
</compile_context>

<pallas_src>
import functools
from typing import NamedTuple

import jax
import jax.numpy as jnp
from jax.experimental import pallas as pl
from jax.experimental.pallas import tpu as pltpu


def _round_up(x, m):
    return (x + m - 1) // m * m


# --------------------------------------------------------------------------
# Kernel: grid = (batch tiles, inner_dim chunks); k is the reduction axis.
# --------------------------------------------------------------------------
def _head_kernel(x_ref, w1_ref, b1_ref, w2_ref, b2_ref, o_ref, acc_ref):
    # x_ref:  (tm, input_dim)     compute dtype (bf16 or f32)
    # w1_ref: (input_dim, tk)     compute dtype   -- k-th chunk of dense weight
    # b1_ref: (1, tk)             f32             -- k-th chunk of dense bias
    # w2_ref: (tk, n_pad)         compute dtype   -- k-th chunk of out_proj weight
    # b2_ref: (1, n_pad)          f32
    # o_ref:  (tm, n_pad)         out dtype, lane-dense (n_pad % 128 == 0)
    # acc_ref:(tm, n_pad)         f32 VMEM scratch (persists across k)
    k = pl.program_id(1)

    @pl.when(k == 0)
    def _():
        acc_ref[...] = jnp.zeros_like(acc_ref)

    # dense chunk: x @ W1[:, k]  (MXU, fp32 accumulate), fp32 bias + tanh (EUP)
    h = jnp.dot(x_ref[...], w1_ref[...], preferred_element_type=jnp.float32)
    h = jnp.tanh(h + b1_ref[...])

    # out_proj partial sum: h_k @ W2[k, :]  (MXU, fp32 accumulate into scratch)
    acc_ref[...] += jnp.dot(h.astype(w2_ref.dtype), w2_ref[...],
                            preferred_element_type=jnp.float32)

    @pl.when(k == pl.num_programs(1) - 1)
    def _():
        o_ref[...] = (acc_ref[...] + b2_ref[...]).astype(o_ref.dtype)


# --------------------------------------------------------------------------
# One-time (per parameter set) weight preparation -- NOT on the request path.
# --------------------------------------------------------------------------
class HeadParams(NamedTuple):
    w1: jax.Array        # [input_dim, k_pad]  compute dtype
    b1: jax.Array        # [1, k_pad]          f32
    w2: jax.Array        # [k_pad, n_pad]      compute dtype
    b2: jax.Array        # [1, n_pad]          f32
    num_classes: int     # static
    tk: int              # static inner_dim chunk size


def prepare_head_params(w1, b1, w2, b2, *, use_bf16=True, tk_target=512):
    """Cast/pad the head parameters once.  w1: [input_dim, inner_dim],
    b1: [inner_dim], w2: [inner_dim, num_classes], b2: [num_classes].
    use_bf16: bf16 weights/activations on the MXU path (fp32 accumulation and
    fp32 bias+tanh are kept on every generation, v5e included)."""
    assert tk_target % 128 == 0
    input_dim, inner_dim = w1.shape
    num_classes = w2.shape[1]
    compute_dtype = jnp.bfloat16 if use_bf16 else jnp.float32

    # inner_dim chunking for the DMA/compute pipeline.
    if inner_dim <= tk_target:
        tk, k_pad = inner_dim, inner_dim
    else:
        tk = tk_target
        k_pad = _round_up(inner_dim, tk)

    n_pad = _round_up(max(num_classes, 128), 128)   # lane-dense output

    w1c = w1.astype(compute_dtype)
    b1c = b1.astype(jnp.float32)
    w2c = w2.astype(compute_dtype)
    b2c = b2.astype(jnp.float32)
    if k_pad != inner_dim:
        # Zero-padding inner_dim is exact: tanh(0 + 0) = 0 and the padded W2
        # rows are zero, so padded columns contribute nothing.
        w1c = jnp.pad(w1c, ((0, 0), (0, k_pad - inner_dim)))
        b1c = jnp.pad(b1c, ((0, k_pad - inner_dim),))
        w2c = jnp.pad(w2c, ((0, k_pad - inner_dim), (0, 0)))
    if n_pad != num_classes:
        w2c = jnp.pad(w2c, ((0, 0), (0, n_pad - num_classes)))
        b2c = jnp.pad(b2c, ((0, n_pad - num_classes),))
    return HeadParams(w1c, b1c.reshape(1, k_pad), w2c, b2c.reshape(1, n_pad),
                      int(num_classes), int(tk))


# --------------------------------------------------------------------------
# Jitted implementation.
# --------------------------------------------------------------------------
@functools.partial(jax.jit,
                   static_argnames=("num_classes", "tk", "tm", "out_dtype"))
def _head_impl(features, w1, b1, w2, b2, *, num_classes, tk, tm, out_dtype):
    B, input_dim = features.shape
    k_pad = w1.shape[1]
    n_pad = w2.shape[1]
    compute_dtype = w1.dtype
    sub = 16 if compute_dtype == jnp.bfloat16 else 8  # sublane packing unit

    # Batch tile: one tile for B <= 256 (weight-DMA-bound regime; avoids each
    # v7x core fetching its own weight copy); 256-row tiles (full MXU rows on
    # v6e/v7x) only for large, compute-bound batches.
    if tm is None:
        tm = 256 if B > 256 else _round_up(B, sub)
    tm = max(sub, _round_up(tm, sub))

    x = features.astype(compute_dtype)

    grid = (pl.cdiv(B, tm), k_pad // tk)

    c_item = jnp.dtype(compute_dtype).itemsize
    o_item = jnp.dtype(out_dtype).itemsize
    cost = pl.CostEstimate(
        flops=2 * B * (input_dim * k_pad + k_pad * n_pad),
        transcendentals=B * k_pad,
        bytes_accessed=(B * input_dim * c_item
                        + input_dim * k_pad * c_item + k_pad * n_pad * c_item
                        + 4 * (k_pad + n_pad)
                        + B * n_pad * o_item))

    # VMEM budget: double-buffered input/output blocks + f32 accumulator.
    vmem_est = (2 * (tm * input_dim * c_item        # x tile
                     + input_dim * tk * c_item      # W1 chunk
                     + tk * 4                       # b1 chunk
                     + tk * n_pad * c_item          # W2 chunk
                     + n_pad * 4                    # b2
                     + tm * n_pad * o_item)         # out tile
                + tm * n_pad * 4)                   # accumulator
    cp_kwargs = {}
    if vmem_est > 12 * 1024 * 1024:                 # beyond v5e default scoped VMEM
        cp_kwargs["vmem_limit_bytes"] = min(int(vmem_est * 3 // 2), 64 * 1024 * 1024)

    out = pl.pallas_call(
        _head_kernel,
        out_shape=jax.ShapeDtypeStruct((B, n_pad), out_dtype),
        grid_spec=pltpu.PrefetchScalarGridSpec(
            num_scalar_prefetch=0,
            grid=grid,
            in_specs=[
                pl.BlockSpec((tm, input_dim), lambda i, k: (i, 0)),
                pl.BlockSpec((input_dim, tk), lambda i, k: (0, k)),
                pl.BlockSpec((1, tk), lambda i, k: (0, k)),
                pl.BlockSpec((tk, n_pad), lambda i, k: (k, 0)),
                pl.BlockSpec((1, n_pad), lambda i, k: (0, 0)),
            ],
            out_specs=pl.BlockSpec((tm, n_pad), lambda i, k: (i, 0)),
            scratch_shapes=[pltpu.VMEM((tm, n_pad), jnp.float32)],
        ),
        compiler_params=pltpu.CompilerParams(
            dimension_semantics=("parallel", "arbitrary"), **cp_kwargs),
        cost_estimate=cost,
    )(x, w1, b1, w2, b2)
    return out[:, :num_classes]


def roberta_classification_head(features, params: HeadParams, *, tm=None,
                                out_dtype=jnp.float32):
    """features: [B, input_dim] (pooled CLS slice); params from
    prepare_head_params().  Returns [B, num_classes] logits in `out_dtype`
    (default f32; bias + tanh + accumulation are always f32).
    Dropout(p=0.0) is the identity.  No host sync here -- callers keep full
    async dispatch and block only when they consume the result."""
    return _head_impl(features, params.w1, params.b1, params.w2, params.b2,
                      num_classes=params.num_classes, tk=params.tk, tm=tm,
                      out_dtype=out_dtype)


def _init_linear(key, fan_in, fan_out, dtype=jnp.float32):
    """nn.Linear-style init U(-1/sqrt(fan_in), 1/sqrt(fan_in)); weight returned
    pre-transposed to [fan_in, fan_out], bias [fan_out]."""
    kw, kb = jax.random.split(key)
    bound = 1.0 / (fan_in ** 0.5)
    w = jax.random.uniform(kw, (fan_in, fan_out), dtype, minval=-bound, maxval=bound)
    b = jax.random.uniform(kb, (fan_out,), dtype, minval=-bound, maxval=bound)
    return w, b


if __name__ == "__main__":
    # Small shapes consistent with the module's forward:
    #   features: [batch=8, input_dim=32] -> dense(32->64) -> tanh -> out_proj(64->8)
    B, input_dim, inner_dim, num_classes = 8, 32, 64, 8

    key = jax.random.PRNGKey(0)
    k_feat, k_dense, k_out = jax.random.split(key, 3)

    features = jax.random.normal(k_feat, (B, input_dim), jnp.float32)
    w1, b1 = _init_linear(k_dense, input_dim, inner_dim)   # dense
    w2, b2 = _init_linear(k_out, inner_dim, num_classes)   # out_proj

    # Plain-JAX reference (same math, fp32).
    ref = jnp.tanh(features @ w1 + b1) @ w2 + b2

    # fp32 path: exact comparison.
    p32 = prepare_head_params(w1, b1, w2, b2, use_bf16=False)
    out_f32 = jax.block_until_ready(roberta_classification_head(features, p32))
    assert out_f32.shape == (B, num_classes)
    assert jnp.allclose(out_f32, ref, atol=1e-5, rtol=1e-5)

    # bf16 weights/activations path (fp32 accumulate): looser tolerance.
    p16 = prepare_head_params(w1, b1, w2, b2, use_bf16=True)
    out_bf16 = jax.block_until_ready(roberta_classification_head(features, p16))
    assert out_bf16.shape == (B, num_classes)
    assert jnp.allclose(out_bf16, ref, atol=3e-2, rtol=3e-2)

    # Ragged batch / tiny class count exercises the partial-tile + class-pad path.
    p32s = prepare_head_params(w1, b1, w2[:, :3], b2[:3], use_bf16=False)
    out5 = jax.block_until_ready(roberta_classification_head(features[:5], p32s))
    assert out5.shape == (5, 3)
    assert jnp.allclose(out5, ref[:5, :3], atol=1e-5, rtol=1e-5)

    # Exercise the inner_dim pipeline/reduction axis (2 chunks of tk=128).
    innerK = 256
    w1b, b1b = _init_linear(jax.random.PRNGKey(1), input_dim, innerK)
    w2b, b2b = _init_linear(jax.random.PRNGKey(2), innerK, num_classes)
    refb = jnp.tanh(features @ w1b + b1b) @ w2b + b2b
    pb = prepare_head_params(w1b, b1b, w2b, b2b, use_bf16=False, tk_target=128)
    outb = jax.block_until_ready(roberta_classification_head(features, pb))
    assert outb.shape == (B, num_classes)
    assert jnp.allclose(outb, refb, atol=1e-5, rtol=1e-5)

    print("KERNEL_OK")
</pallas_src>

<mosaic_0001>
module attributes {stable_mosaic.version = 11 : i64} {
  func.func @_head_kernel(%arg0: i32, %arg1: i32, %arg2: memref<8x32xf32, #tpu.memory_space<vmem>>, %arg3: memref<32x64xf32, #tpu.memory_space<vmem>>, %arg4: memref<1x64xf32, #tpu.memory_space<vmem>>, %arg5: memref<64x128xf32, #tpu.memory_space<vmem>>, %arg6: memref<1x128xf32, #tpu.memory_space<vmem>>, %arg7: memref<8x128xf32, #tpu.memory_space<vmem>>, %arg8: memref<8x128xf32, #tpu.memory_space<vmem>>) attributes {dimension_semantics = [#tpu.dimension_semantics<parallel>, #tpu.dimension_semantics<arbitrary>], iteration_bounds = array<i64: 1, 1>, scalar_prefetch = 0 : i64, scratch_operands = 1 : i64, tpu.core_type = #tpu.core_type<tc>, window_params = [{transform_indices = @transform_0, window_bounds = array<i64: 8, 32>}, {transform_indices = @transform_1, window_bounds = array<i64: 32, 64>}, {transform_indices = @transform_2, window_bounds = array<i64: 1, 64>}, {transform_indices = @transform_3, window_bounds = array<i64: 64, 128>}, {pipeline_mode = #tpu.pipeline_mode<synchronous>, transform_indices = @transform_4, window_bounds = array<i64: 1, 128>}, {transform_indices = @transform_5, window_bounds = array<i64: 8, 128>}]} {
    %c0_i32 = arith.constant 0 : i32
    %0 = arith.cmpi eq, %arg1, %c0_i32 : i32
    %1 = arith.extui %0 : i1 to i32
    %c0_i32_0 = arith.constant 0 : i32
    %2 = arith.cmpi ne, %1, %c0_i32_0 : i32
    scf.if %2 {
      %cst_15 = arith.constant 0.000000e+00 : f32
      %18 = vector.broadcast %cst_15 : f32 to vector<8x128xf32>
      %c0_16 = arith.constant 0 : index
      %c0_17 = arith.constant 0 : index
      %19 = vector.load %arg8[%c0_16, %c0_17] : memref<8x128xf32, #tpu.memory_space<vmem>>, vector<8x128xf32>
      tpu.vector_store %arg8[%c0_16, %c0_17], %18 {strides = array<i32>} : memref<8x128xf32, #tpu.memory_space<vmem>>, vector<8x128xf32>,
    } else {
    }
    %c0 = arith.constant 0 : index
    %c0_1 = arith.constant 0 : index
    %3 = vector.load %arg2[%c0, %c0_1] : memref<8x32xf32, #tpu.memory_space<vmem>>, vector<8x32xf32>
    %c0_2 = arith.constant 0 : index
    %c0_3 = arith.constant 0 : index
    %4 = vector.load %arg3[%c0_2, %c0_3] : memref<32x64xf32, #tpu.memory_space<vmem>>, vector<32x64xf32>
    %cst = arith.constant dense<0.000000e+00> : vector<8x64xf32>
    %5 = tpu.matmul %3, %4, %cst {dimension_numbers = #tpu.dot_dimension_numbers<[1], [0], [0], [1], [0, 0, 1, 1], [], []>} : vector<8x32xf32>, vector<32x64xf32>, vector<8x64xf32> -> vector<8x64xf32>
    %c0_4 = arith.constant 0 : index
    %c0_5 = arith.constant 0 : index
    %6 = vector.load %arg4[%c0_4, %c0_5] : memref<1x64xf32, #tpu.memory_space<vmem>>, vector<1x64xf32>
    %7 = vector.broadcast %6 : vector<1x64xf32> to vector<8x64xf32>
    %8 = arith.addf %5, %7 : vector<8x64xf32>
    %9 = math.tanh %8 : vector<8x64xf32>
    %c0_6 = arith.constant 0 : index
    %c0_7 = arith.constant 0 : index
    %10 = vector.load %arg8[%c0_6, %c0_7] : memref<8x128xf32, #tpu.memory_space<vmem>>, vector<8x128xf32>
    %c0_8 = arith.constant 0 : index
    %c0_9 = arith.constant 0 : index
    %11 = vector.load %arg5[%c0_8, %c0_9] : memref<64x128xf32, #tpu.memory_space<vmem>>, vector<64x128xf32>
    %cst_10 = arith.constant dense<0.000000e+00> : vector<8x128xf32>
    %12 = tpu.matmul %9, %11, %cst_10 {dimension_numbers = #tpu.dot_dimension_numbers<[1], [0], [0], [1], [0, 0, 1, 1], [], []>} : vector<8x64xf32>, vector<64x128xf32>, vector<8x128xf32> -> vector<8x128xf32>
    %13 = arith.addf %10, %12 : vector<8x128xf32>
    %c0_11 = arith.constant 0 : index
    %c0_12 = arith.constant 0 : index
    %14 = vector.load %arg8[%c0_11, %c0_12] : memref<8x128xf32, #tpu.memory_space<vmem>>, vector<8x128xf32>
    tpu.vector_store %arg8[%c0_11, %c0_12], %13 {strides = array<i32>} : memref<8x128xf32, #tpu.memory_space<vmem>>, vector<8x128xf32>,
    %c0_i32_13 = arith.constant 0 : i32
    %15 = arith.cmpi eq, %arg1, %c0_i32_13 : i32
    %16 = arith.extui %15 : i1 to i32
    %c0_i32_14 = arith.constant 0 : i32
    %17 = arith.cmpi ne, %16, %c0_i32_14 : i32
    scf.if %17 {
      %c0_15 = arith.constant 0 : index
      %c0_16 = arith.constant 0 : index
      %18 = vector.load %arg8[%c0_15, %c0_16] : memref<8x128xf32, #tpu.memory_space<vmem>>, vector<8x128xf32>
      %c0_17 = arith.constant 0 : index
      %c0_18 = arith.constant 0 : index
      %19 = vector.load %arg6[%c0_17, %c0_18] : memref<1x128xf32, #tpu.memory_space<vmem>>, vector<1x128xf32>
      %20 = vector.broadcast %19 : vector<1x128xf32> to vector<8x128xf32>
      %21 = arith.addf %18, %20 : vector<8x128xf32>
      %c0_19 = arith.constant 0 : index
      %c0_20 = arith.constant 0 : index
      %22 = vector.load %arg7[%c0_19, %c0_20] : memref<8x128xf32, #tpu.memory_space<vmem>>, vector<8x128xf32>
      tpu.vector_store %arg7[%c0_19, %c0_20], %21 {strides = array<i32>} : memref<8x128xf32, #tpu.memory_space<vmem>>, vector<8x128xf32>,
    } else {
    }
    return
  }
  func.func @transform_0(%arg0: i32, %arg1: i32) -> (i32, i32) {
    %c0_i32 = arith.constant 0 : i32
    %c0_i32_0 = arith.constant 0 : i32
    return %arg0, %c0_i32 : i32, i32
  }
  func.func @transform_1(%arg0: i32, %arg1: i32) -> (i32, i32) {
    %c0_i32 = arith.constant 0 : i32
    %c0_i32_0 = arith.constant 0 : i32
    return %c0_i32, %arg1 : i32, i32
  }
  func.func @transform_2(%arg0: i32, %arg1: i32) -> (i32, i32) {
    %c0_i32 = arith.constant 0 : i32
    %c0_i32_0 = arith.constant 0 : i32
    return %c0_i32, %arg1 : i32, i32
  }
  func.func @transform_3(%arg0: i32, %arg1: i32) -> (i32, i32) {
    %c0_i32 = arith.constant 0 : i32
    %c0_i32_0 = arith.constant 0 : i32
    return %arg1, %c0_i32 : i32, i32
  }
  func.func @transform_4(%arg0: i32, %arg1: i32) -> (i32, i32) {
    %c0_i32 = arith.constant 0 : i32
    %c0_i32_0 = arith.constant 0 : i32
    %c0_i32_1 = arith.constant 0 : i32
    return %c0_i32, %c0_i32_0 : i32, i32
  }
  func.func @transform_5(%arg0: i32, %arg1: i32) -> (i32, i32) {
    %c0_i32 = arith.constant 0 : i32
    %c0_i32_0 = arith.constant 0 : i32
    return %arg0, %c0_i32 : i32, i32
  }
}

</mosaic_0001>

<llo_original>
// kernel: _head_impl.1
$region0: #{_head_impl.1}
  #allocation0 [shape = 'u32[]', space=smem, size = 0x4, offset = 0x4, fixed_abs, tag = 'smem constant byte address 0x4 - core index']
  #allocation1 [shape = 'u32[144,128]{1,0:T(1,128)}', space=vmem, size = 0x12000, scoped, tag = 'internal scratch']
  #allocation2 [shape = 'f32[8,128]{1,0:T(8,128)}', space=vmem, size = 0x1000, scoped, tag = 'scratch operand']
  %s0 = inlined_call_operand.hbm [shape: f32[8,32], index: 0, kind: input, shape index: {}]
  %s1 = inlined_call_operand.hbm [shape: f32[32,64], index: 1, kind: input, shape index: {}]
  %s2 = inlined_call_operand.vmem [shape: f32[1,64], index: 2, kind: input, shape index: {}]
  %s3 = inlined_call_operand.hbm [shape: f32[64,128], index: 3, kind: input, shape index: {}]
  %s4 = inlined_call_operand.vmem [shape: f32[1,128], index: 4, kind: input, shape index: {}]
  %s5 = inlined_call_operand.hbm [shape: f32[8,128], index: 5, kind: output, shape index: {}]
  %s6 = sld [smem:[#allocation0]]
  $region50: #{_head_impl.1} parent=0
    _
  %s8 = ssub.s32 1, %s6
  %s9 = scalar_select 0, %s8, %s6
  $region1: #{_head_impl.1} parent=0
    #allocation3 [shape = 'u8[4096]{0}', space=vmem, size = 0x1000, scoped, tag = 'input window, operand 0, single buffered']
    #allocation4 [shape = 's32[1]{0}', space=sflag, size = 0x4, scoped, tag = 'scoped memory for _head_impl.1']
    #allocation5 [shape = 's32[1]{0}', space=sflag, size = 0x4, scoped, tag = 'scoped memory for _head_impl.1']
    #allocation6 [shape = 'u8[16384]{0}', space=vmem, size = 0x4000, scoped, tag = 'input window, operand 1, single buffered']
    #allocation7 [shape = 's32[1]{0}', space=sflag, size = 0x4, scoped, tag = 'scoped memory for _head_impl.1']
    #allocation8 [shape = 'u8[32768]{0}', space=vmem, size = 0x8000, scoped, tag = 'input window, operand 3, single buffered']
    #allocation9 [shape = 'u8[4096]{0}', space=vmem, size = 0x1000, scoped, tag = 'output window, operand 0, single buffered']
    %10 = vsyncpa [#allocation4], 0
    %11 = vsyncpa [#allocation7], 0
    %12 = vsyncpa [#allocation5], 0
    // Predicated region
    $region2: #{_head_impl.1} parent=1 // pred_check
      _
    $region3: #{_head_impl.1} parent=1 // pred_check_branch
      %14 = sbr.rel (0) target = $region5
    $region4: #{_head_impl.1} parent=1 // pred_region
      %s16 = ssub.s32 128, 128
      %17 = vsyncadd [#allocation4], %s16
      %s19 = sshll.u32 [#allocation3], 4
      %s20 = int_to_ptr.vmem [resolvable:$true] %s19
      %22 = dma.hbm_to_vmem [thread:$0]  %s0, 128, %s20, [#allocation4]
    $region5: #{_head_impl.1} parent=1 // pred_fallthru
      _
    // Predicated region
    $region6: #{_head_impl.1} parent=1 // pred_check
      _
    $region7: #{_head_impl.1} parent=1 // pred_check_branch
      %24 = sbr.rel (0) target = $region9
    $region8: #{_head_impl.1} parent=1 // pred_region
      %s26 = ssub.s32 512, 512
      %27 = vsyncadd [#allocation7], %s26
      %s28 = sshll.u32 [#allocation6], 4
      %s29 = int_to_ptr.vmem [resolvable:$true] %s28
      %34 = dma.hbm_to_vmem [thread:$0]  %s1, 512, %s29, [#allocation7], 128, 128, 8
    $region9: #{_head_impl.1} parent=1 // pred_fallthru
      _
    // Predicated region
    $region10: #{_head_impl.1} parent=1 // pred_check
      _
    $region11: #{_head_impl.1} parent=1 // pred_check_branch
      %36 = sbr.rel (0) target = $region13
    $region12: #{_head_impl.1} parent=1 // pred_region
      _
    $region13: #{_head_impl.1} parent=1 // pred_fallthru
      _
    // Predicated region
    $region14: #{_head_impl.1} parent=1 // pred_check
      _
    $region15: #{_head_impl.1} parent=1 // pred_check_branch
      %38 = sbr.rel (0) target = $region17
    $region16: #{_head_impl.1} parent=1 // pred_region
      %s40 = ssub.s32 1024, 1024
      %41 = vsyncadd [#allocation7], %s40
      %s42 = sshll.u32 [#allocation8], 4
      %s43 = int_to_ptr.vmem [resolvable:$true] %s42
      %48 = dma.hbm_to_vmem [thread:$0]  %s3, 1024, %s43, [#allocation7], 128, 128, 8
    $region17: #{_head_impl.1} parent=1 // pred_fallthru
      _
    // Predicated region
    $region18: #{_head_impl.1} parent=1 // pred_check
      _
    $region19: #{_head_impl.1} parent=1 // pred_check_branch
      %50 = sbr.rel (0) target = $region21
    $region20: #{_head_impl.1} parent=1 // pred_region
      _
    $region21: #{_head_impl.1} parent=1 // pred_fallthru
      _
    // Predicated region
    $region22: #{_head_impl.1} parent=1 // pred_check
      _
    $region23: #{_head_impl.1} parent=1 // pred_check_branch
      %52 = sbr.rel (0) target = $region25
    $region24: #{_head_impl.1} parent=1 // pred_region
      %53 = dma.done [#allocation4], 128
    $region25: #{_head_impl.1} parent=1 // pred_fallthru
      _
    // Predicated region
    $region26: #{_head_impl.1} parent=1 // pred_check
      _
    $region27: #{_head_impl.1} parent=1 // pred_check_branch
      %55 = sbr.rel (0) target = $region29
    $region28: #{_head_impl.1} parent=1 // pred_region
      %56 = dma.done [#allocation7], 512
    $region29: #{_head_impl.1} parent=1 // pred_fallthru
      _
    // Predicated region
    $region30: #{_head_impl.1} parent=1 // pred_check
      _
    $region31: #{_head_impl.1} parent=1 // pred_check_branch
      %58 = sbr.rel (0) target = $region33
    $region32: #{_head_impl.1} parent=1 // pred_region
      %59 = dma.done [#allocation7], 1024
    $region33: #{_head_impl.1} parent=1 // pred_fallthru
      _
    %p60 = scmp.eq.s32.totalorder 0, 0
    // Predicated region
    $region34: #{_head_impl.1} parent=1 // pred_check
      %p61 = pneg %p60
    $region35: #{_head_impl.1} parent=1 // pred_check_branch
      %63 = sbr.rel (%p61) target = $region37
    $region36: #{_head_impl.1} parent=1 // pred_region
      %64 = vst [vmem:[#allocation2] sm:$0xff] 0.0
    $region37: #{_head_impl.1} parent=1 // pred_fallthru
      _
    %v65 = vld [vmem:[#allocation3] sm:$0xff]
    %v66 = vld [vmem:[#allocation6] sm:$0xff]
    %v67 = vld [vmem:[#allocation6 + $0x8] sm:$0xff]
    %v68 = vld [vmem:[#allocation6 + $0x10] sm:$0xff]
    %v69 = vld [vmem:[#allocation6 + $0x18] sm:$0xff]
    %v70 = vld [vmem:[%s2] sm:$0x1]
    %v72 = vlaneseq
    %v73 = vshrl.u32 %v72, 7
    %v74 = vsub.s32 0, %v73
    %v75 = vrot.slane %v70, %v74
    %vm77 = vcmask 261120
    %v79 = vsel %vm77, %v65, 0
    %81 = vmatprep.subr.mxu0 0.0
    %82 = vmatpush1.msra.mxu0 %v66
    %83 = vmatprep.subr.mxu0 0.0
    %84 = vmatpush1.msra.mxu0 %v67
    %85 = vmatprep.subr.mxu0 0.0
    %86 = vmatpush1.msra.mxu0 %v68
    %87 = vmatprep.subr.mxu0 0.0
    %88 = vmatpush1.msra.mxu0 %v69
    %89 = vmatprep.subr.mxu0 0.0
    %90 = vmatpush1.msra.mxu0 0.0
    %91 = vmatprep.subr.mxu0 0.0
    %92 = vmatpush1.msra.mxu0 0.0
    %93 = vmatprep.subr.mxu0 0.0
    %94 = vmatpush1.msra.mxu0 0.0
    %95 = vmatprep.subr.mxu0 0.0
    %96 = vmatpush1.msra.mxu0 0.0
    %97 = vmatprep.subr.mxu0 0.0
    %98 = vmatpush1.msra.mxu0 0.0
    %99 = vmatprep.subr.mxu0 0.0
    %100 = vmatpush1.msra.mxu0 0.0
    %101 = vmatprep.subr.mxu0 0.0
    %102 = vmatpush1.msra.mxu0 0.0
    %103 = vmatprep.subr.mxu0 0.0
    %104 = vmatpush1.msra.mxu0 0.0
    %105 = vmatprep.subr.mxu0 0.0
    %106 = vmatpush1.msra.mxu0 0.0
    %107 = vmatprep.subr.mxu0 0.0
    %108 = vmatpush1.msra.mxu0 0.0
    %109 = vmatprep.subr.mxu0 0.0
    %110 = vmatpush1.msra.mxu0 0.0
    %111 = vmatprep.subr.mxu0 0.0
    %112 = vmatpush1.msra.mxu0 0.0
    %113 = vmatprep.subr.mxu0 0.0
    %114 = vmatpush1.msra.mxu0 0.0
    %115 = vmatprep.subr.mxu0 0.0
    %116 = vmatpush1.msra.mxu0 0.0
    %117 = vmatprep.subr.mxu0 0.0
    %118 = vmatpush1.msra.mxu0 0.0
    %119 = vmatprep.subr.mxu0 0.0
    %120 = vmatpush1.msra.mxu0 0.0
    %121 = vmatprep.subr.mxu0 0.0
    %122 = vmatpush1.msra.mxu0 0.0
    %123 = vmatprep.subr.mxu0 0.0
    %124 = vmatpush1.msra.mxu0 0.0
    %125 = vmatprep.subr.mxu0 0.0
    %126 = vmatpush1.msra.mxu0 0.0
    %127 = vmatprep.subr.mxu0 0.0
    %128 = vmatpush1.msra.mxu0 0.0
    %129 = vmatprep.subr.mxu0 0.0
    %130 = vmatpush1.msra.mxu0 0.0
    %131 = vmatprep.subr.mxu0 0.0
    %132 = vmatpush1.msra.mxu0 0.0
    %133 = vmatprep.subr.mxu0 0.0
    %134 = vmatpush1.msra.mxu0 0.0
    %135 = vmatprep.subr.mxu0 0.0
    %136 = vmatpush1.msra.mxu0 0.0
    %137 = vmatprep.subr.mxu0 0.0
    %138 = vmatpush1.msra.mxu0 0.0
    %139 = vmatprep.subr.mxu0 0.0
    %140 = vmatpush1.msra.mxu0 0.0
    %141 = vmatprep.subr.mxu0 0.0
    %142 = vmatpush1.msra.mxu0 0.0
    %143 = vmatprep.subr.mxu0 0.0
    %144 = vmatpush1.msra.mxu0 0.0
    %145 = vmatprep.mubr.f32.mxu0 0.0
    %146 = vmatmul.mubr.f32.gmra.mrb[0].mxu0 %v79
    %v147 = vpop.f32.mrb[0].mxu0
    %v148 = vadd.f32 %v75, %v147
    %v149 = vpop.f32.mrb[0].mxu0
    %150 = vdwg.mxu0
    %v151 = vtanh.pop %v148
    %v152 = vld [vmem:[#allocation2] sm:$0xff]
    %v153 = vld [vmem:[#allocation8] sm:$0xff]
    %v154 = vld [vmem:[#allocation8 + $0x8] sm:$0xff]
    %v155 = vld [vmem:[#allocation8 + $0x10] sm:$0xff]
    %v156 = vld [vmem:[#allocation8 + $0x18] sm:$0xff]
    %v157 = vld [vmem:[#allocation8 + $0x20] sm:$0xff]
    %v158 = vld [vmem:[#allocation8 + $0x28] sm:$0xff]
    %v159 = vld [vmem:[#allocation8 + $0x30] sm:$0xff]
    %v160 = vld [vmem:[#allocation8 + $0x38] sm:$0xff]
    %vm161 = vcmask 523264
    %v163 = vsel %vm161, %v151, 0
    %165 = vmatprep.subr.mxu0 0.0
    %166 = vmatpush1.msra.mxu0 %v153
    %167 = vmatprep.subr.mxu0 0.0
    %168 = vmatpush1.msra.mxu0 %v154
    %169 = vmatprep.subr.mxu0 0.0
    %170 = vmatpush1.msra.mxu0 %v155
    %171 = vmatprep.subr.mxu0 0.0
    %172 = vmatpush1.msra.mxu0 %v156
    %173 = vmatprep.subr.mxu0 0.0
    %174 = vmatpush1.msra.mxu0 %v157
    %175 = vmatprep.subr.mxu0 0.0
    %176 = vmatpush1.msra.mxu0 %v158
    %177 = vmatprep.subr.mxu0 0.0
    %178 = vmatpush1.msra.mxu0 %v159
    %179 = vmatprep.subr.mxu0 0.0
    %180 = vmatpush1.msra.mxu0 %v160
    %181 = vmatprep.subr.mxu0 0.0
    %182 = vmatpush1.msra.mxu0 0.0
    %183 = vmatprep.subr.mxu0 0.0
    %184 = vmatpush1.msra.mxu0 0.0
    %185 = vmatprep.subr.mxu0 0.0
    %186 = vmatpush1.msra.mxu0 0.0
    %187 = vmatprep.subr.mxu0 0.0
    %188 = vmatpush1.msra.mxu0 0.0
    %189 = vmatprep.subr.mxu0 0.0
    %190 = vmatpush1.msra.mxu0 0.0
    %191 = vmatprep.subr.mxu0 0.0
    %192 = vmatpush1.msra.mxu0 0.0
    %193 = vmatprep.subr.mxu0 0.0
    %194 = vmatpush1.msra.mxu0 0.0
    %195 = vmatprep.subr.mxu0 0.0
    %196 = vmatpush1.msra.mxu0 0.0
    %197 = vmatprep.subr.mxu0 0.0
    %198 = vmatpush1.msra.mxu0 0.0
    %199 = vmatprep.subr.mxu0 0.0
    %200 = vmatpush1.msra.mxu0 0.0
    %201 = vmatprep.subr.mxu0 0.0
    %202 = vmatpush1.msra.mxu0 0.0
    %203 = vmatprep.subr.mxu0 0.0
    %204 = vmatpush1.msra.mxu0 0.0
    %205 = vmatprep.subr.mxu0 0.0
    %206 = vmatpush1.msra.mxu0 0.0
    %207 = vmatprep.subr.mxu0 0.0
    %208 = vmatpush1.msra.mxu0 0.0
    %209 = vmatprep.subr.mxu0 0.0
    %210 = vmatpush1.msra.mxu0 0.0
    %211 = vmatprep.subr.mxu0 0.0
    %212 = vmatpush1.msra.mxu0 0.0
    %213 = vmatprep.subr.mxu0 0.0
    %214 = vmatpush1.msra.mxu0 0.0
    %215 = vmatprep.subr.mxu0 0.0
    %216 = vmatpush1.msra.mxu0 0.0
    %217 = vmatprep.subr.mxu0 0.0
    %218 = vmatpush1.msra.mxu0 0.0
    %219 = vmatprep.subr.mxu0 0.0
    %220 = vmatpush1.msra.mxu0 0.0
    %221 = vmatprep.subr.mxu0 0.0
    %222 = vmatpush1.msra.mxu0 0.0
    %223 = vmatprep.subr.mxu0 0.0
    %224 = vmatpush1.msra.mxu0 0.0
    %225 = vmatprep.subr.mxu0 0.0
    %226 = vmatpush1.msra.mxu0 0.0
    %227 = vmatprep.subr.mxu0 0.0
    %228 = vmatpush1.msra.mxu0 0.0
    %229 = vmatprep.mubr.f32.mxu0 0.0
    %230 = vmatmul.mubr.f32.gmra.mrb[0].mxu0 %v163
    %v231 = vpop.f32.mrb[0].mxu0
    %v232 = vadd.f32 0.0, %v231
    %v233 = vpop.f32.mrb[0].mxu0
    %234 = vdwg.mxu0
    %v235 = vadd.f32 %v152, %v232
    %236 = vst [vmem:[#allocation2] sm:$0xff] %v235
    // Predicated region
    $region38: #{_head_impl.1} parent=1 // pred_check
      %p237 = pneg %p60
    $region39: #{_head_impl.1} parent=1 // pred_check_branch
      %239 = sbr.rel (%p237) target = $region41
    $region40: #{_head_impl.1} parent=1 // pred_region
      %v240 = vld [vmem:[#allocation2] sm:$0xff]
      %v241 = vld [vmem:[%s4] sm:$0x1]
      %v243 = vlaneseq
      %v244 = vshrl.u32 %v243, 7
      %v245 = vsub.s32 0, %v244
      %v246 = vrot.slane %v241, %v245
      %v248 = vadd.f32 %v240, %v246
      %249 = vst [vmem:[#allocation9] sm:$0xff] %v248
    $region41: #{_head_impl.1} parent=1 // pred_fallthru
      _
    // Predicated region
    $region42: #{_head_impl.1} parent=1 // pred_check
      _
    $region43: #{_head_impl.1} parent=1 // pred_check_branch
      %251 = sbr.rel (0) target = $region45
    $region44: #{_head_impl.1} parent=1 // pred_region
      %s253 = ssub.s32 128, 128
      %254 = vsyncadd [#allocation5], %s253
      %s256 = sshll.u32 [#allocation9], 4
      %s257 = int_to_ptr.vmem [resolvable:$true] %s256
      %259 = dma.vmem_to_hbm [thread:$0]  %s257, 128, %s5, [#allocation5]
    $region45: #{_head_impl.1} parent=1 // pred_fallthru
      _
    // Predicated region
    $region46: #{_head_impl.1} parent=1 // pred_check
      _
    $region47: #{_head_impl.1} parent=1 // pred_check_branch
      %261 = sbr.rel (0) target = $region49
    $region48: #{_head_impl.1} parent=1 // pred_region
      %262 = dma.done [#allocation5], 128
    $region49: #{_head_impl.1} parent=1 // pred_fallthru
      _
    %263 = vsyncpa [#allocation4], 1
    %264 = vsyncpa [#allocation7], 1
    %265 = vsyncpa [#allocation5], 1

</llo_original>
